<compile_context>
chip_gen: v5e
topology: v5e:2x2
jax: 0.10.0
libtpu: 0.0.40
codegen_flags: <defaults>
</compile_context>

<pallas_src>
import jax
import jax.numpy as jnp
from jax.experimental import pallas as pl
from jax.experimental.pallas import tpu as pltpu


# ---------------------------------------------------------------------------
# Kernel
# ---------------------------------------------------------------------------
def dueling_q_kernel(
    x_ref,        # (TB, S)   input states, f32
    w1_ref,       # (S, Hp)   fc1 weight (hidden zero-padded to Hp), f32
    b1_ref,       # (1, Hp)   fc1 bias, f32
    wmid_ref,     # (Hp, 2H)  [fc_value || fc_adv] fused weight, bf16
    bmid_ref,     # (1, 2H)   fused mid bias, f32
    whead_ref,    # (2H, Qp)  fused head (value bcast + centered adv), bf16
    bhead_ref,    # (1, Qp)   fused head bias, f32
    q_ref,        # (TB, Qp)  output (q in first A lanes, zeros elsewhere)
):
    x = x_ref[...]                                    # (TB, S)
    s_dim = w1_ref.shape[0]                           # static (== state_dim)

    # --- layer 1 ---------------------------------------------------------
    if s_dim <= 8:
        # Tiny contraction depth -> VPU broadcast-FMAs, skip the MXU.
        h = b1_ref[...] + x[:, 0:1] * w1_ref[0:1, :]  # (TB, Hp)
        for k in range(1, s_dim):                     # static unrolled loop
            h = h + x[:, k : k + 1] * w1_ref[k : k + 1, :]
    else:
        # Larger state dims: let the MXU do it (Mosaic pads K internally).
        h = (
            jnp.dot(x, w1_ref[...], preferred_element_type=jnp.float32)
            + b1_ref[...]
        )
    h = jnp.maximum(h, 0.0)

    # --- fused value/advantage hidden layers: one bf16 MXU matmul ---------
    mid = jnp.dot(
        h.astype(wmid_ref.dtype), wmid_ref[...],
        preferred_element_type=jnp.float32,
    )
    mid = jnp.maximum(mid + bmid_ref[...], 0.0)       # (TB, 2H), lane-dense

    # --- fused heads: mean-subtraction and v + a folded into the weights --
    q_ref[...] = (
        jnp.dot(
            mid.astype(whead_ref.dtype), whead_ref[...],
            preferred_element_type=jnp.float32,
        )
        + bhead_ref[...]
    )


# ---------------------------------------------------------------------------
# Parameter preparation (done once, outside the kernel)
# ---------------------------------------------------------------------------
def prepare_fused_params(p, *, hidden_pad=128, out_pad=8,
                         matmul_dtype=jnp.bfloat16):
    """Fuse / fold / pad the PyTorch-equivalent parameters for the kernel."""
    S, H = p["w1"].shape
    A = p["wa2"].shape[1]
    Hp = max(hidden_pad, H)
    Qp = max(out_pad, A)     # small head padding (A=4 -> 8), not 128

    # 1) fold the advantage mean-subtraction into the advantage head:
    #    a - mean(a) == a @ (I_A - 1/A)   (applies to the bias as well)
    center = jnp.eye(A, dtype=jnp.float32) - 1.0 / A          # (A, A)
    wa2c = p["wa2"] @ center                                  # (H, A)
    ba2c = p["ba2"] @ center                                  # (1, A)

    # 2) fused head: column j gets [wv2[:,0] ; wa2c[:,j]]  => q = v + a_centered
    head_v = jnp.broadcast_to(p["wv2"], (H, A))               # (H, A)
    whead = jnp.concatenate([head_v, wa2c], axis=0)           # (2H, A)
    bhead = p["bv2"] + ba2c                                   # (1, A)

    # 3) fused mid layer: [fc_value || fc_adv]
    wmid = jnp.concatenate([p["wv1"], p["wa1"]], axis=1)      # (H, 2H)
    bmid = jnp.concatenate([p["bv1"], p["ba1"]], axis=1)      # (1, 2H)

    # 4) zero-pad hidden width H -> Hp (padded h columns are relu(0)=0 and hit
    #    zero rows of wmid, so results are unchanged) and head lanes A -> Qp.
    w1p = jnp.pad(p["w1"], ((0, 0), (0, Hp - H)))             # (S, Hp)
    b1p = jnp.pad(p["b1"], ((0, 0), (0, Hp - H)))             # (1, Hp)
    wmidp = jnp.pad(wmid, ((0, Hp - H), (0, 0)))              # (Hp, 2H)
    wheadp = jnp.pad(whead, ((0, 0), (0, Qp - A)))            # (2H, Qp)
    bheadp = jnp.pad(bhead, ((0, 0), (0, Qp - A)))            # (1, Qp)

    # MXU operands in bf16 (f32 accumulation happens in the kernel).
    return dict(
        w1=w1p, b1=b1p,
        wmid=wmidp.astype(matmul_dtype), bmid=bmid,
        whead=wheadp.astype(matmul_dtype), bhead=bheadp,
        action_dim=int(A),
    )


# ---------------------------------------------------------------------------
# Wrapper
# ---------------------------------------------------------------------------
def dueling_q_forward(x, fused, *, block_b=2048):
    """x: (B, state_dim) float32. fused: output of prepare_fused_params."""
    B, S = x.shape
    A = fused["action_dim"]
    Hp = fused["w1"].shape[1]
    M2 = fused["wmid"].shape[1]
    Qp = fused["whead"].shape[1]

    def _round_up(a, m):
        return ((a + m - 1) // m) * m

    # Batch tiling:
    #  * small batches: one tile (block == full array, no batch padding)
    #  * mid-size batches (>= 1024): split into >= 2 tiles so both v7x
    #    TensorCores get work through the "parallel" grid axis
    #  * large batches: fixed block_b tiles
    if B > block_b:
        TB = block_b
    elif B >= 1024:
        TB = _round_up(pl.cdiv(B, 2), 8)
    else:
        TB = B
    Bp = _round_up(B, TB)
    if Bp != B:
        x = jnp.pad(x, ((0, Bp - B), (0, 0)))

    grid = (Bp // TB,)

    # Rough double-buffered per-step VMEM working set (x and q tiles are
    # lane-padded to 128 in VMEM, plus h/mid temporaries and weights).
    est_bytes = TB * 4 * (2 * 128 + 2 * 128 + 128 + 256) + (1 << 20)
    compiler_kwargs = dict(dimension_semantics=("parallel",))
    if est_bytes > 12 * 1024 * 1024:
        # Only needed for very large batch tiles; v5e's scoped default is 16 MiB.
        compiler_kwargs["vmem_limit_bytes"] = int(
            min(est_bytes + (4 << 20), 56 << 20)
        )

    q_padded = pl.pallas_call(
        dueling_q_kernel,
        out_shape=jax.ShapeDtypeStruct((Bp, Qp), jnp.float32),
        grid=grid,
        in_specs=[
            pl.BlockSpec((TB, S), lambda i: (i, 0)),    # x: tiled over batch
            pl.BlockSpec((S, Hp), lambda i: (0, 0)),    # weights: VMEM-resident
            pl.BlockSpec((1, Hp), lambda i: (0, 0)),
            pl.BlockSpec((Hp, M2), lambda i: (0, 0)),
            pl.BlockSpec((1, M2), lambda i: (0, 0)),
            pl.BlockSpec((M2, Qp), lambda i: (0, 0)),
            pl.BlockSpec((1, Qp), lambda i: (0, 0)),
        ],
        out_specs=pl.BlockSpec((TB, Qp), lambda i: (i, 0)),
        compiler_params=pltpu.CompilerParams(**compiler_kwargs),
    )(
        x,
        fused["w1"], fused["b1"],
        fused["wmid"], fused["bmid"],
        fused["whead"], fused["bhead"],
    )

    # Strip batch padding and the (small, Qp=8) zero-padded head lanes.
    return q_padded[:B, :A]


# ---------------------------------------------------------------------------
# Init + pure-JAX reference (matches PyTorch semantics)
# ---------------------------------------------------------------------------
def init_params(key, state_dim=2, action_dim=4, hidden_dim=64):
    keys = jax.random.split(key, 10)

    def linear(kw, kb, fan_in, fan_out):
        bound = 1.0 / jnp.sqrt(jnp.float32(fan_in))
        w = jax.random.uniform(kw, (fan_in, fan_out), jnp.float32, -bound, bound)
        b = jax.random.uniform(kb, (1, fan_out), jnp.float32, -bound, bound)
        return w, b

    w1, b1 = linear(keys[0], keys[1], state_dim, hidden_dim)
    wv1, bv1 = linear(keys[2], keys[3], hidden_dim, hidden_dim)
    wv2, bv2 = linear(keys[4], keys[5], hidden_dim, 1)
    wa1, ba1 = linear(keys[6], keys[7], hidden_dim, hidden_dim)
    wa2, ba2 = linear(keys[8], keys[9], hidden_dim, action_dim)

    return dict(w1=w1, b1=b1, wv1=wv1, bv1=bv1, wv2=wv2, bv2=bv2,
                wa1=wa1, ba1=ba1, wa2=wa2, ba2=ba2)


def reference_forward(x, p):
    h = jnp.maximum(x @ p["w1"] + p["b1"], 0.0)
    v = jnp.maximum(h @ p["wv1"] + p["bv1"], 0.0)
    v = v @ p["wv2"] + p["bv2"]
    a = jnp.maximum(h @ p["wa1"] + p["ba1"], 0.0)
    a = a @ p["wa2"] + p["ba2"]
    return v + (a - jnp.mean(a, axis=1, keepdims=True))


if __name__ == "__main__":
    key = jax.random.PRNGKey(0)
    k_params, k_x = jax.random.split(key)

    state_dim, action_dim, hidden_dim = 2, 4, 64
    batch = 8

    params = init_params(k_params, state_dim, action_dim, hidden_dim)
    fused = prepare_fused_params(params)

    x = jax.random.normal(k_x, (batch, state_dim), jnp.float32)

    q = dueling_q_forward(x, fused)
    q = jax.block_until_ready(q)

    q_ref = reference_forward(x, params)
    assert q.shape == (batch, action_dim)
    # bf16 MXU operands with f32 accumulation -> loosened tolerance vs the
    # full-f32 reference (observed error is a few 1e-3 at these scales).
    assert jnp.allclose(q, q_ref, atol=2e-2, rtol=2e-2), (
        "mismatch vs reference, max abs err = "
        f"{float(jnp.max(jnp.abs(q - q_ref)))}"
    )

    print("KERNEL_OK")
</pallas_src>

<mosaic_0001>
module attributes {stable_mosaic.version = 11 : i64} {
  func.func @dueling_q_kernel(%arg0: i32, %arg1: memref<8x2xf32, #tpu.memory_space<vmem>>, %arg2: memref<2x128xf32, #tpu.memory_space<vmem>>, %arg3: memref<1x128xf32, #tpu.memory_space<vmem>>, %arg4: memref<128x128xbf16, #tpu.memory_space<vmem>>, %arg5: memref<1x128xf32, #tpu.memory_space<vmem>>, %arg6: memref<128x8xbf16, #tpu.memory_space<vmem>>, %arg7: memref<1x8xf32, #tpu.memory_space<vmem>>, %arg8: memref<8x8xf32, #tpu.memory_space<vmem>>) attributes {dimension_semantics = [#tpu.dimension_semantics<parallel>], iteration_bounds = array<i64: 1>, scalar_prefetch = 0 : i64, scratch_operands = 0 : i64, tpu.core_type = #tpu.core_type<tc>, window_params = [{transform_indices = @transform_0, window_bounds = array<i64: 8, 2>}, {pipeline_mode = #tpu.pipeline_mode<synchronous>, transform_indices = @transform_1, window_bounds = array<i64: 2, 128>}, {pipeline_mode = #tpu.pipeline_mode<synchronous>, transform_indices = @transform_2, window_bounds = array<i64: 1, 128>}, {pipeline_mode = #tpu.pipeline_mode<synchronous>, transform_indices = @transform_3, window_bounds = array<i64: 128, 128>}, {pipeline_mode = #tpu.pipeline_mode<synchronous>, transform_indices = @transform_4, window_bounds = array<i64: 1, 128>}, {pipeline_mode = #tpu.pipeline_mode<synchronous>, transform_indices = @transform_5, window_bounds = array<i64: 128, 8>}, {pipeline_mode = #tpu.pipeline_mode<synchronous>, transform_indices = @transform_6, window_bounds = array<i64: 1, 8>}, {transform_indices = @transform_7, window_bounds = array<i64: 8, 8>}]} {
    %c0 = arith.constant 0 : index
    %c0_0 = arith.constant 0 : index
    %0 = vector.load %arg1[%c0, %c0_0] : memref<8x2xf32, #tpu.memory_space<vmem>>, vector<8x2xf32>
    %c0_1 = arith.constant 0 : index
    %c0_2 = arith.constant 0 : index
    %1 = vector.load %arg3[%c0_1, %c0_2] : memref<1x128xf32, #tpu.memory_space<vmem>>, vector<1x128xf32>
    %2 = vector.extract_strided_slice %0 {offsets = [0, 0], sizes = [8, 1], strides = [1, 1]} : vector<8x2xf32> to vector<8x1xf32>
    %c0_3 = arith.constant 0 : index
    %c0_4 = arith.constant 0 : index
    %3 = vector.load %arg2[%c0_3, %c0_4] : memref<2x128xf32, #tpu.memory_space<vmem>>, vector<1x128xf32>
    %4 = vector.broadcast %2 : vector<8x1xf32> to vector<8x128xf32>
    %5 = vector.broadcast %3 : vector<1x128xf32> to vector<8x128xf32>
    %6 = arith.mulf %4, %5 : vector<8x128xf32>
    %7 = vector.broadcast %1 : vector<1x128xf32> to vector<8x128xf32>
    %8 = arith.addf %7, %6 : vector<8x128xf32>
    %9 = vector.extract_strided_slice %0 {offsets = [0, 1], sizes = [8, 1], strides = [1, 1]} : vector<8x2xf32> to vector<8x1xf32>
    %c1 = arith.constant 1 : index
    %c0_5 = arith.constant 0 : index
    %10 = vector.load %arg2[%c1, %c0_5] : memref<2x128xf32, #tpu.memory_space<vmem>>, vector<1x128xf32>
    %11 = vector.broadcast %9 : vector<8x1xf32> to vector<8x128xf32>
    %12 = vector.broadcast %10 : vector<1x128xf32> to vector<8x128xf32>
    %13 = arith.mulf %11, %12 : vector<8x128xf32>
    %14 = arith.addf %8, %13 : vector<8x128xf32>
    %cst = arith.constant 0.000000e+00 : f32
    %15 = vector.broadcast %cst : f32 to vector<8x128xf32>
    %16 = arith.maximumf %14, %15 : vector<8x128xf32>
    %17 = arith.truncf %16 : vector<8x128xf32> to vector<8x128xbf16>
    %c0_6 = arith.constant 0 : index
    %c0_7 = arith.constant 0 : index
    %18 = vector.load %arg4[%c0_6, %c0_7] : memref<128x128xbf16, #tpu.memory_space<vmem>>, vector<128x128xbf16>
    %cst_8 = arith.constant dense<0.000000e+00> : vector<8x128xf32>
    %19 = tpu.matmul %17, %18, %cst_8 {dimension_numbers = #tpu.dot_dimension_numbers<[1], [0], [0], [1], [0, 0, 1, 1], [], []>} : vector<8x128xbf16>, vector<128x128xbf16>, vector<8x128xf32> -> vector<8x128xf32>
    %c0_9 = arith.constant 0 : index
    %c0_10 = arith.constant 0 : index
    %20 = vector.load %arg5[%c0_9, %c0_10] : memref<1x128xf32, #tpu.memory_space<vmem>>, vector<1x128xf32>
    %21 = vector.broadcast %20 : vector<1x128xf32> to vector<8x128xf32>
    %22 = arith.addf %19, %21 : vector<8x128xf32>
    %cst_11 = arith.constant 0.000000e+00 : f32
    %23 = vector.broadcast %cst_11 : f32 to vector<8x128xf32>
    %24 = arith.maximumf %22, %23 : vector<8x128xf32>
    %25 = arith.truncf %24 : vector<8x128xf32> to vector<8x128xbf16>
    %c0_12 = arith.constant 0 : index
    %c0_13 = arith.constant 0 : index
    %26 = vector.load %arg6[%c0_12, %c0_13] : memref<128x8xbf16, #tpu.memory_space<vmem>>, vector<128x8xbf16>
    %cst_14 = arith.constant dense<0.000000e+00> : vector<8x8xf32>
    %27 = tpu.matmul %25, %26, %cst_14 {dimension_numbers = #tpu.dot_dimension_numbers<[1], [0], [0], [1], [0, 0, 1, 1], [], []>} : vector<8x128xbf16>, vector<128x8xbf16>, vector<8x8xf32> -> vector<8x8xf32>
    %c0_15 = arith.constant 0 : index
    %c0_16 = arith.constant 0 : index
    %28 = vector.load %arg7[%c0_15, %c0_16] : memref<1x8xf32, #tpu.memory_space<vmem>>, vector<1x8xf32>
    %29 = vector.broadcast %28 : vector<1x8xf32> to vector<8x8xf32>
    %30 = arith.addf %27, %29 : vector<8x8xf32>
    %c0_17 = arith.constant 0 : index
    %c0_18 = arith.constant 0 : index
    %31 = vector.load %arg8[%c0_17, %c0_18] : memref<8x8xf32, #tpu.memory_space<vmem>>, vector<8x8xf32>
    tpu.vector_store %arg8[%c0_17, %c0_18], %30 {strides = array<i32>} : memref<8x8xf32, #tpu.memory_space<vmem>>, vector<8x8xf32>,
    return
  }
  func.func @transform_0(%arg0: i32) -> (i32, i32) {
    %c0_i32 = arith.constant 0 : i32
    %c0_i32_0 = arith.constant 0 : i32
    return %arg0, %c0_i32 : i32, i32
  }
  func.func @transform_1(%arg0: i32) -> (i32, i32) {
    %c0_i32 = arith.constant 0 : i32
    %c0_i32_0 = arith.constant 0 : i32
    %c0_i32_1 = arith.constant 0 : i32
    return %c0_i32, %c0_i32_0 : i32, i32
  }
  func.func @transform_2(%arg0: i32) -> (i32, i32) {
    %c0_i32 = arith.constant 0 : i32
    %c0_i32_0 = arith.constant 0 : i32
    %c0_i32_1 = arith.constant 0 : i32
    return %c0_i32, %c0_i32_0 : i32, i32
  }
  func.func @transform_3(%arg0: i32) -> (i32, i32) {
    %c0_i32 = arith.constant 0 : i32
    %c0_i32_0 = arith.constant 0 : i32
    %c0_i32_1 = arith.constant 0 : i32
    return %c0_i32, %c0_i32_0 : i32, i32
  }
  func.func @transform_4(%arg0: i32) -> (i32, i32) {
    %c0_i32 = arith.constant 0 : i32
    %c0_i32_0 = arith.constant 0 : i32
    %c0_i32_1 = arith.constant 0 : i32
    return %c0_i32, %c0_i32_0 : i32, i32
  }
  func.func @transform_5(%arg0: i32) -> (i32, i32) {
    %c0_i32 = arith.constant 0 : i32
    %c0_i32_0 = arith.constant 0 : i32
    %c0_i32_1 = arith.constant 0 : i32
    return %c0_i32, %c0_i32_0 : i32, i32
  }
  func.func @transform_6(%arg0: i32) -> (i32, i32) {
    %c0_i32 = arith.constant 0 : i32
    %c0_i32_0 = arith.constant 0 : i32
    %c0_i32_1 = arith.constant 0 : i32
    return %c0_i32, %c0_i32_0 : i32, i32
  }
  func.func @transform_7(%arg0: i32) -> (i32, i32) {
    %c0_i32 = arith.constant 0 : i32
    %c0_i32_0 = arith.constant 0 : i32
    return %arg0, %c0_i32 : i32, i32
  }
}

</mosaic_0001>

<llo_original>
// kernel: tpu_custom_call.1
$region0: #{tpu_custom_call.1}
  #allocation0 [shape = 'u32[]', space=smem, size = 0x4, offset = 0x4, fixed_abs, tag = 'smem constant byte address 0x4 - core index']
  #allocation1 [shape = 'u32[72,128]{1,0:T(1,128)}', space=vmem, size = 0x9000, scoped, tag = 'internal scratch']
  %s0 = inlined_call_operand.vmem [shape: f32[8,2], index: 0, kind: input, shape index: {}]
  %s1 = inlined_call_operand.vmem [shape: f32[2,128], index: 1, kind: input, shape index: {}]
  %s2 = inlined_call_operand.vmem [shape: f32[1,128], index: 2, kind: input, shape index: {}]
  %s3 = inlined_call_operand.vmem [shape: bf16[128,128], index: 3, kind: input, shape index: {}]
  %s4 = inlined_call_operand.vmem [shape: f32[1,128], index: 4, kind: input, shape index: {}]
  %s5 = inlined_call_operand.vmem [shape: bf16[128,8], index: 5, kind: input, shape index: {}]
  %s6 = inlined_call_operand.vmem [shape: f32[1,8], index: 6, kind: input, shape index: {}]
  %s7 = inlined_call_operand.hbm [shape: f32[8,8], index: 7, kind: output, shape index: {}]
  %s8 = sld [smem:[#allocation0]]
  $region38: #{tpu_custom_call.1} parent=0
    _
  %s10 = ssub.s32 1, %s8
  %s11 = scalar_select 0, %s10, %s8
  $region1: #{tpu_custom_call.1} parent=0
    #allocation2 [shape = 'u8[4096]{0}', space=vmem, size = 0x1000, scoped, tag = 'output window, operand 0, single buffered']
    #allocation3 [shape = 's32[1]{0}', space=sflag, size = 0x4, scoped, tag = 'scoped memory for tpu_custom_call.1']
    %12 = vsyncpa [#allocation3], 0
    // Predicated region
    $region2: #{tpu_custom_call.1} parent=1 // pred_check
      _
    $region3: #{tpu_custom_call.1} parent=1 // pred_check_branch
      %14 = sbr.rel (0) target = $region5
    $region4: #{tpu_custom_call.1} parent=1 // pred_region
      _
    $region5: #{tpu_custom_call.1} parent=1 // pred_fallthru
      _
    // Predicated region
    $region6: #{tpu_custom_call.1} parent=1 // pred_check
      _
    $region7: #{tpu_custom_call.1} parent=1 // pred_check_branch
      %16 = sbr.rel (0) target = $region9
    $region8: #{tpu_custom_call.1} parent=1 // pred_region
      _
    $region9: #{tpu_custom_call.1} parent=1 // pred_fallthru
      _
    // Predicated region
    $region10: #{tpu_custom_call.1} parent=1 // pred_check
      _
    $region11: #{tpu_custom_call.1} parent=1 // pred_check_branch
      %18 = sbr.rel (0) target = $region13
    $region12: #{tpu_custom_call.1} parent=1 // pred_region
      _
    $region13: #{tpu_custom_call.1} parent=1 // pred_fallthru
      _
    // Predicated region
    $region14: #{tpu_custom_call.1} parent=1 // pred_check
      _
    $region15: #{tpu_custom_call.1} parent=1 // pred_check_branch
      %20 = sbr.rel (0) target = $region17
    $region16: #{tpu_custom_call.1} parent=1 // pred_region
      _
    $region17: #{tpu_custom_call.1} parent=1 // pred_fallthru
      _
    // Predicated region
    $region18: #{tpu_custom_call.1} parent=1 // pred_check
      _
    $region19: #{tpu_custom_call.1} parent=1 // pred_check_branch
      %22 = sbr.rel (0) target = $region21
    $region20: #{tpu_custom_call.1} parent=1 // pred_region
      _
    $region21: #{tpu_custom_call.1} parent=1 // pred_fallthru
      _
    // Predicated region
    $region22: #{tpu_custom_call.1} parent=1 // pred_check
      _
    $region23: #{tpu_custom_call.1} parent=1 // pred_check_branch
      %24 = sbr.rel (0) target = $region25
    $region24: #{tpu_custom_call.1} parent=1 // pred_region
      _
    $region25: #{tpu_custom_call.1} parent=1 // pred_fallthru
      _
    // Predicated region
    $region26: #{tpu_custom_call.1} parent=1 // pred_check
      _
    $region27: #{tpu_custom_call.1} parent=1 // pred_check_branch
      %26 = sbr.rel (0) target = $region29
    $region28: #{tpu_custom_call.1} parent=1 // pred_region
      _
    $region29: #{tpu_custom_call.1} parent=1 // pred_fallthru
      _
    %v27 = vld [vmem:[%s0] sm:$0xff]
    %v28 = vld [vmem:[%s2] sm:$0x1]
    %v29 = vld [vmem:[%s1] sm:$0x1]
    %31 = vset.pattern.permute.xlu0 0
    %32 = vperm.xlu0 %31, %v27
    %v33 = vpop.permute.xlu0 %32
    %v35 = vperm.slane %v29, 0
    %v36 = vmul.f32 %v33, %v35
    %v38 = vperm.slane %v28, 0
    %v40 = vadd.f32 %v38, %v36
    %v41 = vld [vmem:[%s1 + $0x1] sm:$0x1]
    %42 = vset.pattern.permute.xlu0 1
    %43 = vperm.xlu0 %42, %v27
    %v44 = vpop.permute.xlu0 %43
    %v46 = vperm.slane %v41, 0
    %v47 = vmul.f32 %v44, %v46
    %v48 = vadd.f32 %v40, %v47
    %v49 = vmax.f32 %v48, 0.0
    %v50 = vpack.c.bf16 %v49, %v49
    %v51 = vld [vmem:[%s3] sm:$0xf]
    %v52 = vld [vmem:[%s3 + $0x4] sm:$0xf]
    %v53 = vld [vmem:[%s3 + $0x8] sm:$0xf]
    %v54 = vld [vmem:[%s3 + $0xc] sm:$0xf]
    %v55 = vld [vmem:[%s3 + $0x10] sm:$0xf]
    %v56 = vld [vmem:[%s3 + $0x14] sm:$0xf]
    %v57 = vld [vmem:[%s3 + $0x18] sm:$0xf]
    %v58 = vld [vmem:[%s3 + $0x1c] sm:$0xf]
    %v59 = vld [vmem:[%s3 + $0x20] sm:$0xf]
    %v60 = vld [vmem:[%s3 + $0x24] sm:$0xf]
    %v61 = vld [vmem:[%s3 + $0x28] sm:$0xf]
    %v62 = vld [vmem:[%s3 + $0x2c] sm:$0xf]
    %v63 = vld [vmem:[%s3 + $0x30] sm:$0xf]
    %v64 = vld [vmem:[%s3 + $0x34] sm:$0xf]
    %v65 = vld [vmem:[%s3 + $0x38] sm:$0xf]
    %v66 = vld [vmem:[%s3 + $0x3c] sm:$0xf]
    %v67 = vld [vmem:[%s4] sm:$0x1]
    %v69 = vperm.slane %v67, 0
    %v87 = vunpack.c.l.b16 %v51
    %v88 = vunpack.c.l.b16 %v52
    %v89 = vunpack.c.l.b16 %v53
    %v90 = vunpack.c.l.b16 %v54
    %v91 = vunpack.c.l.b16 %v55
    %v92 = vunpack.c.l.b16 %v56
    %v93 = vunpack.c.l.b16 %v57
    %v94 = vunpack.c.l.b16 %v58
    %v95 = vunpack.c.l.b16 %v59
    %v96 = vunpack.c.l.b16 %v60
    %v97 = vunpack.c.l.b16 %v61
    %v98 = vunpack.c.l.b16 %v62
    %v99 = vunpack.c.l.b16 %v63
    %v100 = vunpack.c.l.b16 %v64
    %v101 = vunpack.c.l.b16 %v65
    %v102 = vunpack.c.l.b16 %v66
    %v103 = vpack.c.b16 %v88, %v87
    %v104 = vpack.c.b16 %v90, %v89
    %v105 = vpack.c.b16 %v92, %v91
    %v106 = vpack.c.b16 %v94, %v93
    %v107 = vpack.c.b16 %v96, %v95
    %v108 = vpack.c.b16 %v98, %v97
    %v109 = vpack.c.b16 %v100, %v99
    %v110 = vpack.c.b16 %v102, %v101
    %119 = vmatpush.bf16.msra.mxu0 %v110
    %120 = vmatpush.bf16.msra.mxu0 %v109
    %121 = vmatpush.bf16.msra.mxu0 %v108
    %122 = vmatpush.bf16.msra.mxu0 %v107
    %123 = vmatpush.bf16.msra.mxu0 %v106
    %124 = vmatpush.bf16.msra.mxu0 %v105
    %125 = vmatpush.bf16.msra.mxu0 %v104
    %126 = vmatpush.bf16.msra.mxu0 %v103
    %127 = vmatmul.bf16.gmra.mxu0 %v50
    %v128 = vpop.f32.mrf.mxu0
    %v129 = vadd.f32 %v69, %v128
    %v130 = vpop.f32.mrf.mxu0
    %131 = vdwg.mxu0
    %v132 = vmax.f32 %v129, 0.0
    %v133 = vpack.c.bf16 %v132, %v132
    %v134 = vld [vmem:[%s5] sm:$0xf]
    %v135 = vld [vmem:[%s5 + $0x4] sm:$0xf]
    %v136 = vld [vmem:[%s5 + $0x8] sm:$0xf]
    %v137 = vld [vmem:[%s5 + $0xc] sm:$0xf]
    %v138 = vld [vmem:[%s5 + $0x10] sm:$0xf]
    %v139 = vld [vmem:[%s5 + $0x14] sm:$0xf]
    %v140 = vld [vmem:[%s5 + $0x18] sm:$0xf]
    %v141 = vld [vmem:[%s5 + $0x1c] sm:$0xf]
    %v142 = vld [vmem:[%s5 + $0x20] sm:$0xf]
    %v143 = vld [vmem:[%s5 + $0x24] sm:$0xf]
    %v144 = vld [vmem:[%s5 + $0x28] sm:$0xf]
    %v145 = vld [vmem:[%s5 + $0x2c] sm:$0xf]
    %v146 = vld [vmem:[%s5 + $0x30] sm:$0xf]
    %v147 = vld [vmem:[%s5 + $0x34] sm:$0xf]
    %v148 = vld [vmem:[%s5 + $0x38] sm:$0xf]
    %v149 = vld [vmem:[%s5 + $0x3c] sm:$0xf]
    %v150 = vld [vmem:[%s6] sm:$0x1]
    %v152 = vperm.slane %v150, 0
    %v170 = vunpack.c.l.b16 %v134
    %v171 = vunpack.c.l.b16 %v135
    %v172 = vunpack.c.l.b16 %v136
    %v173 = vunpack.c.l.b16 %v137
    %v174 = vunpack.c.l.b16 %v138
    %v175 = vunpack.c.l.b16 %v139
    %v176 = vunpack.c.l.b16 %v140
    %v177 = vunpack.c.l.b16 %v141
    %v178 = vunpack.c.l.b16 %v142
    %v179 = vunpack.c.l.b16 %v143
    %v180 = vunpack.c.l.b16 %v144
    %v181 = vunpack.c.l.b16 %v145
    %v182 = vunpack.c.l.b16 %v146
    %v183 = vunpack.c.l.b16 %v147
    %v184 = vunpack.c.l.b16 %v148
    %v185 = vunpack.c.l.b16 %v149
    %v186 = vpack.c.b16 %v171, %v170
    %v187 = vpack.c.b16 %v173, %v172
    %v188 = vpack.c.b16 %v175, %v174
    %v189 = vpack.c.b16 %v177, %v176
    %v190 = vpack.c.b16 %v179, %v178
    %v191 = vpack.c.b16 %v181, %v180
    %v192 = vpack.c.b16 %v183, %v182
    %v193 = vpack.c.b16 %v185, %v184
    %202 = vmatpush.bf16.msra.mxu0 %v193
    %203 = vmatpush.bf16.msra.mxu0 %v192
    %204 = vmatpush.bf16.msra.mxu0 %v191
    %205 = vmatpush.bf16.msra.mxu0 %v190
    %206 = vmatpush.bf16.msra.mxu0 %v189
    %207 = vmatpush.bf16.msra.mxu0 %v188
    %208 = vmatpush.bf16.msra.mxu0 %v187
    %209 = vmatpush.bf16.msra.mxu0 %v186
    %210 = vmatmul.bf16.gmra.mxu0 %v133
    %v211 = vpop.f32.mrf.mxu0
    %v212 = vadd.f32 %v152, %v211
    %v213 = vpop.f32.mrf.mxu0
    %214 = vdwg.mxu0
    %vm215 = vcmask 64512
    %216 = vst.msk [vmem:[#allocation2] sm:$0xff] %vm215, %v212
    // Predicated region
    $region30: #{tpu_custom_call.1} parent=1 // pred_check
      _
    $region31: #{tpu_custom_call.1} parent=1 // pred_check_branch
      %218 = sbr.rel (0) target = $region33
    $region32: #{tpu_custom_call.1} parent=1 // pred_region
      %220 = vsyncadd [#allocation3], 0
      %s222 = sshll.u32 [#allocation2], 4
      %s223 = int_to_ptr.vmem [resolvable:$true] %s222
      %s224 = sshll.u32 %s7, 4
      %s225 = int_to_ptr.hbm [resolvable:$true] %s224
      %227 = dma.vmem_to_hbm [thread:$0]  %s223, 128, %s225, [#allocation3]
    $region33: #{tpu_custom_call.1} parent=1 // pred_fallthru
      _
    // Predicated region
    $region34: #{tpu_custom_call.1} parent=1 // pred_check
      _
    $region35: #{tpu_custom_call.1} parent=1 // pred_check_branch
      %229 = sbr.rel (0) target = $region37
    $region36: #{tpu_custom_call.1} parent=1 // pred_region
      %231 = dma.done [#allocation3], 128
    $region37: #{tpu_custom_call.1} parent=1 // pred_fallthru
      _
    %232 = vsyncpa [#allocation3], 1

</llo_original>
